<compile_context>
chip_gen: v6e
topology: v6e:2x2x1
jax: 0.10.0
libtpu: 0.0.40
codegen_flags: <defaults>
</compile_context>

<pallas_src>
import jax
import jax.numpy as jnp
from jax import lax
from jax.experimental import pallas as pl
from jax.experimental.pallas import tpu as pltpu


def _mnrl_kernel(a_ref, b_all_ref, b_diag_ref, out_ref):
    """Per-row partials of the loss for one row tile.

    a_ref:      (TB, D) VMEM — row tile of embeddings_a (native dtype)
    b_all_ref:  (B,  D) VMEM — full embeddings_b, resident across grid steps
    b_diag_ref: (TB, D) VMEM — rows of embeddings_b matching this row tile
    out_ref:    (TB, 1) VMEM — logsumexp_j(scores[r, :]) - scores[r, r]
    """
    a = a_ref[...]
    b = b_all_ref[...]

    # scores[r, j] = <a_r, b_j>: contract last (lane) dims on the MXU, no
    # transpose/relayout of b, f32 accumulation.
    scores = lax.dot_general(
        a, b,
        dimension_numbers=(((1,), (1,)), ((), ())),
        preferred_element_type=jnp.float32)                      # (TB, B) f32

    # Diagonal entries for this row tile as an elementwise row-dot (VPU).
    diag = jnp.sum(
        a.astype(jnp.float32) * b_diag_ref[...].astype(jnp.float32),
        axis=1, keepdims=True)                                   # (TB, 1)

    # Numerically stable row-wise logsumexp (XLU reduce + EUP exp/log).
    m = jnp.max(scores, axis=1, keepdims=True)                   # (TB, 1)
    sum_exp = jnp.sum(jnp.exp(scores - m), axis=1, keepdims=True)
    lse = m + jnp.log(sum_exp)                                   # (TB, 1)

    out_ref[...] = lse - diag


def _pick_row_tile(batch: int) -> int:
    """Largest candidate row tile (multiple of 8) that divides the batch;
    otherwise fall back to a single full-array block (always layout-legal)."""
    for cand in (512, 256, 128, 64, 32, 16, 8):
        if cand < batch and batch % cand == 0:
            return cand
    return batch


def multiple_negatives_ranking_loss(embeddings_a: jax.Array,
                                    embeddings_b: jax.Array) -> jax.Array:
    """Pallas wrapper. embeddings_{a,b}: (B, D). Returns scalar f32 loss."""
    assert embeddings_a.shape == embeddings_b.shape
    assert embeddings_a.ndim == 2
    B, D = embeddings_a.shape

    tb = _pick_row_tile(B)
    num_tiles = B // tb

    per_row = pl.pallas_call(
        _mnrl_kernel,
        out_shape=jax.ShapeDtypeStruct((B, 1), jnp.float32),
        grid=(num_tiles,),
        in_specs=[
            pl.BlockSpec((tb, D), lambda i: (i, 0)),   # a: row tile i
            pl.BlockSpec((B, D), lambda i: (0, 0)),    # b: full, VMEM-resident
            pl.BlockSpec((tb, D), lambda i: (i, 0)),   # b rows matching tile i
        ],
        out_specs=pl.BlockSpec((tb, 1), lambda i: (i, 0)),
        compiler_params=pltpu.CompilerParams(
            dimension_semantics=("parallel",)),
    )(embeddings_a, embeddings_b, embeddings_b)

    # mean(lse - diag) == -mean(diag) + mean(logsumexp); single scalar multiply
    return jnp.sum(per_row) * jnp.float32(1.0 / B)


def _reference_loss(a, b):
    """Pure-JAX reference mirroring the PyTorch method exactly."""
    scores = jnp.matmul(a.astype(jnp.float32), b.astype(jnp.float32).T)
    diagonal_mean = jnp.mean(jnp.diag(scores))
    mean_log_row_sum_exp = jnp.mean(jax.scipy.special.logsumexp(scores, axis=1))
    return -diagonal_mean + mean_log_row_sum_exp


if __name__ == "__main__":
    key = jax.random.PRNGKey(0)
    k_a, k_b, k_c, k_d = jax.random.split(key, 4)

    # Case 1: small batch (single full-array block). Lane-dense D = 128.
    B1, D1 = 8, 128
    a1 = jax.random.normal(k_a, (B1, D1), dtype=jnp.float32)
    b1 = jax.random.normal(k_b, (B1, D1), dtype=jnp.float32)
    loss1 = jax.block_until_ready(multiple_negatives_ranking_loss(a1, b1))
    ref1 = jax.block_until_ready(_reference_loss(a1, b1))
    assert jnp.allclose(loss1, ref1, rtol=1e-4, atol=1e-4), (loss1, ref1)

    # Case 2: exercises the tiled grid path (2 row tiles, b kept resident).
    B2, D2 = 256, 128
    a2 = jax.random.normal(k_c, (B2, D2), dtype=jnp.float32)
    b2 = jax.random.normal(k_d, (B2, D2), dtype=jnp.float32)
    loss2 = jax.block_until_ready(multiple_negatives_ranking_loss(a2, b2))
    ref2 = jax.block_until_ready(_reference_loss(a2, b2))
    assert jnp.allclose(loss2, ref2, rtol=1e-4, atol=1e-4), (loss2, ref2)

    print("KERNEL_OK")
</pallas_src>

<mosaic_0001>
module attributes {stable_mosaic.version = 11 : i64} {
  func.func @_mnrl_kernel(%arg0: i32, %arg1: memref<8x128xf32, #tpu.memory_space<vmem>>, %arg2: memref<8x128xf32, #tpu.memory_space<vmem>>, %arg3: memref<8x128xf32, #tpu.memory_space<vmem>>, %arg4: memref<8x1xf32, #tpu.memory_space<vmem>>) attributes {dimension_semantics = [#tpu.dimension_semantics<parallel>], iteration_bounds = array<i64: 1>, scalar_prefetch = 0 : i64, scratch_operands = 0 : i64, tpu.core_type = #tpu.core_type<tc>, window_params = [{transform_indices = @transform_0, window_bounds = array<i64: 8, 128>}, {pipeline_mode = #tpu.pipeline_mode<synchronous>, transform_indices = @transform_1, window_bounds = array<i64: 8, 128>}, {transform_indices = @transform_2, window_bounds = array<i64: 8, 128>}, {transform_indices = @transform_3, window_bounds = array<i64: 8, 1>}]} {
    %c0 = arith.constant 0 : index
    %c0_0 = arith.constant 0 : index
    %0 = vector.load %arg1[%c0, %c0_0] : memref<8x128xf32, #tpu.memory_space<vmem>>, vector<8x128xf32>
    %c0_1 = arith.constant 0 : index
    %c0_2 = arith.constant 0 : index
    %1 = vector.load %arg2[%c0_1, %c0_2] : memref<8x128xf32, #tpu.memory_space<vmem>>, vector<8x128xf32>
    %cst = arith.constant dense<0.000000e+00> : vector<8x8xf32>
    %2 = tpu.matmul %0, %1, %cst {dimension_numbers = #tpu.dot_dimension_numbers<[1], [1], [0], [0], [0, 0, 1, 0], [], []>} : vector<8x128xf32>, vector<8x128xf32>, vector<8x8xf32> -> vector<8x8xf32>
    %c0_3 = arith.constant 0 : index
    %c0_4 = arith.constant 0 : index
    %3 = vector.load %arg3[%c0_3, %c0_4] : memref<8x128xf32, #tpu.memory_space<vmem>>, vector<8x128xf32>
    %4 = arith.mulf %0, %3 : vector<8x128xf32>
    %cst_5 = arith.constant dense<0.000000e+00> : vector<8xf32>
    %5 = vector.multi_reduction <add>, %4, %cst_5 [1] : vector<8x128xf32> to vector<8xf32>
    %6 = vector.shape_cast %5 : vector<8xf32> to vector<8x1xf32>
    %cst_6 = arith.constant dense<0xFF800000> : vector<8xf32>
    %7 = vector.multi_reduction <maximumf>, %2, %cst_6 [1] : vector<8x8xf32> to vector<8xf32>
    %8 = vector.shape_cast %7 : vector<8xf32> to vector<8x1xf32>
    %9 = vector.broadcast %8 : vector<8x1xf32> to vector<8x8xf32>
    %10 = arith.subf %2, %9 : vector<8x8xf32>
    %11 = math.exp %10 : vector<8x8xf32>
    %cst_7 = arith.constant dense<0.000000e+00> : vector<8xf32>
    %12 = vector.multi_reduction <add>, %11, %cst_7 [1] : vector<8x8xf32> to vector<8xf32>
    %13 = vector.shape_cast %12 : vector<8xf32> to vector<8x1xf32>
    %14 = math.log %13 : vector<8x1xf32>
    %15 = arith.addf %8, %14 : vector<8x1xf32>
    %16 = arith.subf %15, %6 : vector<8x1xf32>
    %c0_8 = arith.constant 0 : index
    %c0_9 = arith.constant 0 : index
    %17 = vector.load %arg4[%c0_8, %c0_9] : memref<8x1xf32, #tpu.memory_space<vmem>>, vector<8x1xf32>
    tpu.vector_store %arg4[%c0_8, %c0_9], %16 {strides = array<i32>} : memref<8x1xf32, #tpu.memory_space<vmem>>, vector<8x1xf32>,
    return
  }
  func.func @transform_0(%arg0: i32) -> (i32, i32) {
    %c0_i32 = arith.constant 0 : i32
    %c0_i32_0 = arith.constant 0 : i32
    return %arg0, %c0_i32 : i32, i32
  }
  func.func @transform_1(%arg0: i32) -> (i32, i32) {
    %c0_i32 = arith.constant 0 : i32
    %c0_i32_0 = arith.constant 0 : i32
    %c0_i32_1 = arith.constant 0 : i32
    return %c0_i32, %c0_i32_0 : i32, i32
  }
  func.func @transform_2(%arg0: i32) -> (i32, i32) {
    %c0_i32 = arith.constant 0 : i32
    %c0_i32_0 = arith.constant 0 : i32
    return %arg0, %c0_i32 : i32, i32
  }
  func.func @transform_3(%arg0: i32) -> (i32, i32) {
    %c0_i32 = arith.constant 0 : i32
    %c0_i32_0 = arith.constant 0 : i32
    return %arg0, %c0_i32 : i32, i32
  }
}

</mosaic_0001>

<llo_original>
// kernel: tpu_custom_call.1
$region0: #{tpu_custom_call.1}
  #allocation0 [shape = 'u32[]', space=smem, size = 0x4, offset = 0x4, fixed_abs, tag = 'smem constant byte address 0x4 - core index']
  #allocation1 [shape = 'u32[144,128]{1,0:T(1,128)}', space=vmem, size = 0x12000, scoped, tag = 'internal scratch']
  %s0 = inlined_call_operand.hbm [shape: f32[8,128], index: 0, kind: input, shape index: {}]
  %s1 = inlined_call_operand.hbm [shape: f32[8,128], index: 1, kind: input, shape index: {}]
  %s2 = inlined_call_operand.hbm [shape: f32[8,128], index: 2, kind: input, shape index: {}]
  %s3 = inlined_call_operand.vmem [shape: f32[8,1], index: 3, kind: output, shape index: {}]
  %s4 = sld [smem:[#allocation0]]
  $region34: #{tpu_custom_call.1} parent=0
    _
  %s6 = ssub.s32 1, %s4
  %s7 = scalar_select 0, %s6, %s4
  $region1: #{tpu_custom_call.1} parent=0
    #allocation2 [shape = 'u8[4096]{0}', space=vmem, size = 0x1000, scoped, tag = 'input window, operand 0, single buffered']
    #allocation3 [shape = 's32[1]{0}', space=sflag, size = 0x4, scoped, tag = 'scoped memory for tpu_custom_call.1']
    #allocation4 [shape = 'u8[4096]{0}', space=vmem, size = 0x1000, scoped, tag = 'input window, operand 1, single buffered']
    #allocation5 [shape = 's32[1]{0}', space=sflag, size = 0x4, scoped, tag = 'scoped memory for tpu_custom_call.1']
    #allocation6 [shape = 'u8[4096]{0}', space=vmem, size = 0x1000, scoped, tag = 'input window, operand 2, single buffered']
    %8 = vsyncpa [#allocation3], 0
    %9 = vsyncpa [#allocation5], 0
    // Predicated region
    $region2: #{tpu_custom_call.1} parent=1 // pred_check
      _
    $region3: #{tpu_custom_call.1} parent=1 // pred_check_branch
      %11 = sbr.rel (0) target = $region5
    $region4: #{tpu_custom_call.1} parent=1 // pred_region
      %s13 = ssub.s32 128, 128
      %14 = vsyncadd [#allocation3], %s13
      %s16 = sshll.u32 [#allocation2], 4
      %s17 = int_to_ptr.vmem [resolvable:$true] %s16
      %19 = dma.hbm_to_vmem [thread:$0]  %s0, 128, %s17, [#allocation3]
    $region5: #{tpu_custom_call.1} parent=1 // pred_fallthru
      _
    // Predicated region
    $region6: #{tpu_custom_call.1} parent=1 // pred_check
      _
    $region7: #{tpu_custom_call.1} parent=1 // pred_check_branch
      %21 = sbr.rel (0) target = $region9
    $region8: #{tpu_custom_call.1} parent=1 // pred_region
      %s23 = ssub.s32 128, 128
      %24 = vsyncadd [#allocation5], %s23
      %s26 = sshll.u32 [#allocation4], 4
      %s27 = int_to_ptr.vmem [resolvable:$true] %s26
      %29 = dma.hbm_to_vmem [thread:$0]  %s1, 128, %s27, [#allocation5]
    $region9: #{tpu_custom_call.1} parent=1 // pred_fallthru
      _
    // Predicated region
    $region10: #{tpu_custom_call.1} parent=1 // pred_check
      _
    $region11: #{tpu_custom_call.1} parent=1 // pred_check_branch
      %31 = sbr.rel (0) target = $region13
    $region12: #{tpu_custom_call.1} parent=1 // pred_region
      %s33 = ssub.s32 128, 128
      %34 = vsyncadd [#allocation5], %s33
      %s36 = sshll.u32 [#allocation6], 4
      %s37 = int_to_ptr.vmem [resolvable:$true] %s36
      %39 = dma.hbm_to_vmem [thread:$0]  %s2, 128, %s37, [#allocation5]
    $region13: #{tpu_custom_call.1} parent=1 // pred_fallthru
      _
    // Predicated region
    $region14: #{tpu_custom_call.1} parent=1 // pred_check
      _
    $region15: #{tpu_custom_call.1} parent=1 // pred_check_branch
      %41 = sbr.rel (0) target = $region17
    $region16: #{tpu_custom_call.1} parent=1 // pred_region
      %42 = dma.done [#allocation3], 128
    $region17: #{tpu_custom_call.1} parent=1 // pred_fallthru
      _
    // Predicated region
    $region18: #{tpu_custom_call.1} parent=1 // pred_check
      _
    $region19: #{tpu_custom_call.1} parent=1 // pred_check_branch
      %44 = sbr.rel (0) target = $region21
    $region20: #{tpu_custom_call.1} parent=1 // pred_region
      %45 = dma.done [#allocation5], 128
    $region21: #{tpu_custom_call.1} parent=1 // pred_fallthru
      _
    // Predicated region
    $region22: #{tpu_custom_call.1} parent=1 // pred_check
      _
    $region23: #{tpu_custom_call.1} parent=1 // pred_check_branch
      %47 = sbr.rel (0) target = $region25
    $region24: #{tpu_custom_call.1} parent=1 // pred_region
      %48 = dma.done [#allocation5], 128
    $region25: #{tpu_custom_call.1} parent=1 // pred_fallthru
      _
    %v49 = vld [vmem:[#allocation2] sm:$0xff]
    %v50 = vld [vmem:[#allocation4] sm:$0xff]
    %51 = vmatprep.subr.mxu0 0.0
    %52 = vmatpush1.xpose.msra.mxu0 0.0
    %53 = vmatprep.subr.mxu0 0.0
    %54 = vmatpush1.xpose.msra.mxu0 0.0
    %55 = vmatprep.subr.mxu0 0.0
    %56 = vmatpush1.xpose.msra.mxu0 0.0
    %57 = vmatprep.subr.mxu0 0.0
    %58 = vmatpush1.xpose.msra.mxu0 0.0
    %59 = vmatprep.subr.mxu0 0.0
    %60 = vmatpush1.xpose.msra.mxu0 0.0
    %61 = vmatprep.subr.mxu0 0.0
    %62 = vmatpush1.xpose.msra.mxu0 0.0
    %63 = vmatprep.subr.mxu0 0.0
    %64 = vmatpush1.xpose.msra.mxu0 0.0
    %65 = vmatprep.subr.mxu0 0.0
    %66 = vmatpush1.xpose.msra.mxu0 0.0
    %67 = vmatprep.subr.mxu0 0.0
    %68 = vmatpush1.xpose.msra.mxu0 0.0
    %69 = vmatprep.subr.mxu0 0.0
    %70 = vmatpush1.xpose.msra.mxu0 0.0
    %71 = vmatprep.subr.mxu0 0.0
    %72 = vmatpush1.xpose.msra.mxu0 0.0
    %73 = vmatprep.subr.mxu0 0.0
    %74 = vmatpush1.xpose.msra.mxu0 0.0
    %75 = vmatprep.subr.mxu0 0.0
    %76 = vmatpush1.xpose.msra.mxu0 0.0
    %77 = vmatprep.subr.mxu0 0.0
    %78 = vmatpush1.xpose.msra.mxu0 0.0
    %79 = vmatprep.subr.mxu0 0.0
    %80 = vmatpush1.xpose.msra.mxu0 0.0
    %81 = vmatprep.subr.mxu0 0.0
    %82 = vmatpush1.xpose.msra.mxu0 %v50
    %83 = vmatprep.subr.mxu0 0.0
    %84 = vmatpush2.xpose.msra.mxu0 0.0
    %85 = vmatprep.subr.mxu0 0.0
    %86 = vmatpush2.xpose.msra.mxu0 0.0
    %87 = vmatprep.subr.mxu0 0.0
    %88 = vmatpush2.xpose.msra.mxu0 0.0
    %89 = vmatprep.subr.mxu0 0.0
    %90 = vmatpush2.xpose.msra.mxu0 0.0
    %91 = vmatprep.subr.mxu0 0.0
    %92 = vmatpush2.xpose.msra.mxu0 0.0
    %93 = vmatprep.subr.mxu0 0.0
    %94 = vmatpush2.xpose.msra.mxu0 0.0
    %95 = vmatprep.subr.mxu0 0.0
    %96 = vmatpush2.xpose.msra.mxu0 0.0
    %97 = vmatprep.subr.mxu0 0.0
    %98 = vmatpush2.xpose.msra.mxu0 0.0
    %99 = vmatprep.subr.mxu0 0.0
    %100 = vmatpush2.xpose.msra.mxu0 0.0
    %101 = vmatprep.subr.mxu0 0.0
    %102 = vmatpush2.xpose.msra.mxu0 0.0
    %103 = vmatprep.subr.mxu0 0.0
    %104 = vmatpush2.xpose.msra.mxu0 0.0
    %105 = vmatprep.subr.mxu0 0.0
    %106 = vmatpush2.xpose.msra.mxu0 0.0
    %107 = vmatprep.subr.mxu0 0.0
    %108 = vmatpush2.xpose.msra.mxu0 0.0
    %109 = vmatprep.subr.mxu0 0.0
    %110 = vmatpush2.xpose.msra.mxu0 0.0
    %111 = vmatprep.subr.mxu0 0.0
    %112 = vmatpush2.xpose.msra.mxu0 0.0
    %113 = vmatprep.subr.mxu0 0.0
    %114 = vmatpush2.xpose.msra.mxu0 0.0
    %115 = vmatprep.mubr.f32.mxu0 0.0
    %116 = vmatmul.mubr.f32.gmra.mxu0 %v49
    %v117 = vpop.f32.mrf.mxu0
    %v118 = vadd.f32 0.0, %v117
    %v119 = vpop.f32.mrf.mxu0
    %120 = vdwg.mxu0
    %v121 = vld [vmem:[#allocation6] sm:$0xff]
    %v122 = vmul.f32 %v49, %v121
    %123 = vadd.xlane.f32.xlu0 %v122
    %v124 = vpop.xlane.xlu0 %123
    %vm125 = vcmask 64512
    %v126 = vsel %vm125, %v118, -inf
    %127 = vmax.xlane.f32.xlu0 %v126
    %v128 = vpop.xlane.xlu0 %127
    %v129 = vsub.f32 %v118, %v128
    %v130 = vmul.f32 %v129, 1.442695
    %v131 = vpow.pop %v130
    %v132 = vsel %vm125, %v131, 0.0
    %133 = vadd.xlane.f32.xlu0 %v132
    %v134 = vpop.xlane.xlu0 %133
    %v135 = vlog2.pop %v134
    %v136 = vmul.f32 %v135, 0.6931472
    %v137 = vadd.f32 %v128, %v136
    %v138 = vsub.f32 %v137, %v124
    %vm139 = vcmask 7168
    %140 = vst.msk [vmem:[%s3] sm:$0xff] %vm139, %v138
    // Predicated region
    $region26: #{tpu_custom_call.1} parent=1 // pred_check
      _
    $region27: #{tpu_custom_call.1} parent=1 // pred_check_branch
      %142 = sbr.rel (0) target = $region29
    $region28: #{tpu_custom_call.1} parent=1 // pred_region
      _
    $region29: #{tpu_custom_call.1} parent=1 // pred_fallthru
      _
    // Predicated region
    $region30: #{tpu_custom_call.1} parent=1 // pred_check
      _
    $region31: #{tpu_custom_call.1} parent=1 // pred_check_branch
      %144 = sbr.rel (0) target = $region33
    $region32: #{tpu_custom_call.1} parent=1 // pred_region
      _
    $region33: #{tpu_custom_call.1} parent=1 // pred_fallthru
      _
    %145 = vsyncpa [#allocation3], 1
    %146 = vsyncpa [#allocation5], 1

</llo_original>
